<compile_context>
chip_gen: v7x
topology: tpu7x:2x2x1
jax: 0.10.0
libtpu: 0.0.40
codegen_flags: <defaults>
</compile_context>

<pallas_src>
import functools

import jax
import jax.numpy as jnp
from jax.experimental import pallas as pl
from jax.experimental.pallas import tpu as pltpu


def _cdiv(a, b):
    return -(-a // b)


def _round_up(v, m):
    return ((v + m - 1) // m) * m


def _vmem_limit_bytes():
    """~75% of the per-core physical VMEM, capped at 96 MiB (leaves headroom)."""
    cap = 0
    try:
        info = pltpu.get_tpu_info()
        cap = int(getattr(info, "vmem_capacity_bytes", 0) or 0)
    except Exception:
        cap = 0
    if cap <= 0:
        cap = 128 * 1024 * 1024
    return min((cap * 3) // 4, 96 * 1024 * 1024)


def _default_num_parts():
    """2 partial-sum parts only on chips with 2 TensorCores per device."""
    try:
        kind = jax.devices()[0].device_kind.lower()
    except Exception:
        return 1
    if "v7" in kind or "7x" in kind or "v4" in kind or "v5p" in kind:
        return 2
    return 1


def _pick_tile(tile_n, rows_per_part, d, c, vmem_limit):
    cap = max(8, _round_up(rows_per_part, 8))
    if tile_n is not None:
        return max(8, min(_round_up(int(tile_n), 8), cap))
    # Per-tile VMEM: 2x (tile, D) input buffers (f32 worst case) + ~5 live
    # (tile, C) f32 epilogue temporaries.  Resident bf16 W charged separately.
    budget = int(vmem_limit * 0.6) - 2 * d * c * 2
    budget = max(budget, vmem_limit // 8)
    tile = 8
    for t in (512, 256, 128, 64, 32, 16, 8):
        if 2 * t * d * 4 + 5 * t * c * 4 <= budget:
            tile = t
            break
    return min(tile, cap)


def _armsoftmax_kernel(x_ref, wn_ref, lab_ref, loss_ref, acc_ref, *, margin, scale):
    i = pl.program_id(1)

    # Zero the resident per-part accumulators on the first row tile.
    @pl.when(i == 0)
    def _():
        loss_ref[...] = jnp.zeros_like(loss_ref)
        acc_ref[...] = jnp.zeros_like(acc_ref)

    lab = lab_ref[...]                       # (TN, 1) int32, -1 marks padded rows
    valid = lab >= 0

    # Row-normalize x (rsqrt -> EUP slot), bf16 for the MXU.
    xf = x_ref[...].astype(jnp.float32)      # (TN, D)
    inv_x = jax.lax.rsqrt(
        jnp.maximum(jnp.sum(xf * xf, axis=1, keepdims=True), 1e-24))
    x_n = (xf * inv_x).astype(jnp.bfloat16)

    # cos(theta) on the MXU, f32 accumulation.  W is already column-normalized bf16.
    costh = jnp.dot(x_n, wn_ref[...], preferred_element_type=jnp.float32)  # (TN, C)
    tn, c = costh.shape

    col = jax.lax.broadcasted_iota(jnp.int32, (tn, c), 1)
    is_tgt = col == lab                      # boolean one-hot (no f32 materialization)

    # s * (cos - m * onehot); gather the label-column logit.
    costh_m_s = scale * jnp.where(is_tgt, costh - margin, costh)
    target = jnp.sum(jnp.where(is_tgt, costh_m_s, 0.0), axis=1, keepdims=True)

    # ReLU-reduction gate fused into the softmax input (label column always
    # survives: its reduct is exactly 0).  Only costh_m_s + one mask stay live.
    gate = costh_m_s >= target
    row_max = jnp.max(jnp.where(gate, costh_m_s, 0.0), axis=1, keepdims=True)
    sum_exp = jnp.sum(jnp.exp(jnp.where(gate, costh_m_s - row_max, -row_max)),
                      axis=1, keepdims=True)
    per_row = jnp.log(sum_exp) + row_max - target    # CE per row
    loss_ref[...] += jnp.sum(jnp.where(valid, per_row, 0.0))

    # Top-1: the label is correct iff it attains the row max.  (Ties at a lower
    # column index count as correct here, unlike torch's first-max argmax.)
    correct = jnp.logical_and(target >= row_max, valid)
    acc_ref[...] += jnp.sum(correct.astype(jnp.float32))


def armsoftmax_loss(x, label, W, *, margin=0.2, scale=30.0,
                    tile_n=None, num_parts=None):
    """x: (B, T, D), label: (B,) int, W: (D, C) -> (loss, prec1)."""
    assert x.ndim == 3
    B, T, D = x.shape
    Dw, C = W.shape
    assert Dw == D
    N = B * T

    x2 = x.reshape(N, D)                                   # keep native dtype
    lab = jnp.repeat(label.astype(jnp.int32), T).reshape(N, 1)

    # Pre-normalize W columns once outside the kernel (tiny XLA op) -> bf16.
    wf = W.astype(jnp.float32)
    w_n = (wf * jax.lax.rsqrt(
        jnp.maximum(jnp.sum(wf * wf, axis=0, keepdims=True), 1e-24))
           ).astype(jnp.bfloat16)

    # ---- row tiling: (num_parts 'parallel') x (tiles_per_part 'arbitrary') ----
    if num_parts is None:
        num_parts = _default_num_parts()
    num_parts = max(1, min(int(num_parts), _cdiv(N, 8)))

    vmem_limit = _vmem_limit_bytes()
    rows_per_part = _cdiv(N, num_parts)
    tile = _pick_tile(tile_n, rows_per_part, D, C, vmem_limit)
    tiles_per_part = _cdiv(rows_per_part, tile)
    n_pad = num_parts * tiles_per_part * tile

    if n_pad != N:
        x2 = jnp.pad(x2, ((0, n_pad - N), (0, 0)))
        lab = jnp.pad(lab, ((0, n_pad - N), (0, 0)), constant_values=-1)

    kernel = functools.partial(_armsoftmax_kernel,
                               margin=float(margin), scale=float(scale))

    def run(w_pipeline_mode):
        if w_pipeline_mode is None:
            w_spec = pl.BlockSpec((D, C), lambda p, i: (0, 0))
        else:
            # Constant index_map -> never re-fetched; single-buffer it.
            w_spec = pl.BlockSpec((D, C), lambda p, i: (0, 0),
                                  pipeline_mode=w_pipeline_mode)
        return pl.pallas_call(
            kernel,
            out_shape=(
                jax.ShapeDtypeStruct((num_parts, 1, 1), jnp.float32),
                jax.ShapeDtypeStruct((num_parts, 1, 1), jnp.float32),
            ),
            grid=(num_parts, tiles_per_part),
            in_specs=[
                pl.BlockSpec((tile, D), lambda p, i: (p * tiles_per_part + i, 0)),
                w_spec,
                pl.BlockSpec((tile, 1), lambda p, i: (p * tiles_per_part + i, 0)),
            ],
            out_specs=(
                pl.BlockSpec((1, 1, 1), lambda p, i: (p, 0, 0)),
                pl.BlockSpec((1, 1, 1), lambda p, i: (p, 0, 0)),
            ),
            compiler_params=pltpu.CompilerParams(
                dimension_semantics=("parallel", "arbitrary"),
                vmem_limit_bytes=vmem_limit,
            ),
        )(x2, w_n, lab)

    try:
        loss_parts, acc_parts = run(pl.Buffered(1))
    except Exception:
        # Fallback: default (double-buffered) pipeline mode for W.
        loss_parts, acc_parts = run(None)

    # Finalize with the TRUE row count (padded rows were masked out in-kernel).
    loss = jnp.sum(loss_parts) / float(N)
    prec1 = jnp.sum(acc_parts) * (100.0 / float(N))
    return loss, prec1


if __name__ == "__main__":
    # Small shapes consistent with the module: x is (batch, segments, embedding_dim).
    # T=7 deliberately makes N=14 ragged so the padding/masking path is exercised.
    B, T, D, C = 2, 7, 32, 128
    margin, scale = 0.2, 30.0

    key = jax.random.PRNGKey(0)
    kx, kw, kl = jax.random.split(key, 3)

    x = jax.random.normal(kx, (B, T, D), dtype=jnp.float32)

    # Deterministic xavier_normal_ init for W (embedding_dim, num_classes):
    # PyTorch fan_in = size(1) = C, fan_out = size(0) = D, gain = 1.
    std = (2.0 / (C + D)) ** 0.5
    W = std * jax.random.normal(kw, (D, C), dtype=jnp.float32)

    label = jax.random.randint(kl, (B,), 0, C, dtype=jnp.int32)

    loss, prec1 = armsoftmax_loss(x, label, W, margin=margin, scale=scale)
    jax.block_until_ready((loss, prec1))

    print("KERNEL_OK")
</pallas_src>

<mosaic_0001>
module attributes {stable_mosaic.version = 11 : i64} {
  func.func @_armsoftmax_kernel(%arg0: i32, %arg1: i32, %arg2: memref<16x32xf32, #tpu.memory_space<vmem>>, %arg3: memref<32x128xbf16, #tpu.memory_space<vmem>>, %arg4: memref<16x1xi32, #tpu.memory_space<vmem>>, %arg5: memref<1x1x1xf32, #tpu.memory_space<vmem>>, %arg6: memref<1x1x1xf32, #tpu.memory_space<vmem>>) attributes {dimension_semantics = [#tpu.dimension_semantics<parallel>, #tpu.dimension_semantics<arbitrary>], iteration_bounds = array<i64: 1, 1>, scalar_prefetch = 0 : i64, scratch_operands = 0 : i64, tpu.core_type = #tpu.core_type<tc>, window_params = [{transform_indices = @transform_0, window_bounds = array<i64: 16, 32>}, {pipeline_mode = #tpu.pipeline_mode<synchronous>, transform_indices = @transform_1, window_bounds = array<i64: 32, 128>}, {transform_indices = @transform_2, window_bounds = array<i64: 16, 1>}, {transform_indices = @transform_3, window_bounds = array<i64: 1, 1, 1>}, {transform_indices = @transform_4, window_bounds = array<i64: 1, 1, 1>}]} {
    %c0_i32 = arith.constant 0 : i32
    %0 = arith.cmpi eq, %arg1, %c0_i32 : i32
    %1 = arith.extui %0 : i1 to i32
    %c0_i32_0 = arith.constant 0 : i32
    %2 = arith.cmpi ne, %1, %c0_i32_0 : i32
    scf.if %2 {
      %cst_32 = arith.constant 0.000000e+00 : f32
      %71 = vector.broadcast %cst_32 : f32 to vector<1x1x1xf32>
      %c0_33 = arith.constant 0 : index
      %c0_34 = arith.constant 0 : index
      %c0_35 = arith.constant 0 : index
      %72 = vector.load %arg5[%c0_33, %c0_34, %c0_35] : memref<1x1x1xf32, #tpu.memory_space<vmem>>, vector<1x1x1xf32>
      tpu.vector_store %arg5[%c0_33, %c0_34, %c0_35], %71 {strides = array<i32>} : memref<1x1x1xf32, #tpu.memory_space<vmem>>, vector<1x1x1xf32>,
      %cst_36 = arith.constant 0.000000e+00 : f32
      %73 = vector.broadcast %cst_36 : f32 to vector<1x1x1xf32>
      %c0_37 = arith.constant 0 : index
      %c0_38 = arith.constant 0 : index
      %c0_39 = arith.constant 0 : index
      %74 = vector.load %arg6[%c0_37, %c0_38, %c0_39] : memref<1x1x1xf32, #tpu.memory_space<vmem>>, vector<1x1x1xf32>
      tpu.vector_store %arg6[%c0_37, %c0_38, %c0_39], %73 {strides = array<i32>} : memref<1x1x1xf32, #tpu.memory_space<vmem>>, vector<1x1x1xf32>,
    } else {
    }
    %c0 = arith.constant 0 : index
    %c0_1 = arith.constant 0 : index
    %3 = vector.load %arg4[%c0, %c0_1] : memref<16x1xi32, #tpu.memory_space<vmem>>, vector<16x1xi32>
    %c0_i32_2 = arith.constant 0 : i32
    %4 = vector.broadcast %c0_i32_2 : i32 to vector<16x1xi32>
    %5 = arith.cmpi sge, %3, %4 : vector<16x1xi32>
    %c0_3 = arith.constant 0 : index
    %c0_4 = arith.constant 0 : index
    %6 = vector.load %arg2[%c0_3, %c0_4] : memref<16x32xf32, #tpu.memory_space<vmem>>, vector<16x32xf32>
    %7 = arith.mulf %6, %6 : vector<16x32xf32>
    %cst = arith.constant dense<0.000000e+00> : vector<16xf32>
    %8 = vector.multi_reduction <add>, %7, %cst [1] : vector<16x32xf32> to vector<16xf32>
    %9 = vector.shape_cast %8 : vector<16xf32> to vector<16x1xf32>
    %cst_5 = arith.constant 1.000000e-24 : f32
    %10 = vector.broadcast %cst_5 : f32 to vector<16x1xf32>
    %11 = arith.maximumf %9, %10 : vector<16x1xf32>
    %12 = math.rsqrt %11 : vector<16x1xf32>
    %13 = vector.broadcast %12 : vector<16x1xf32> to vector<16x32xf32>
    %14 = arith.mulf %6, %13 : vector<16x32xf32>
    %15 = arith.truncf %14 : vector<16x32xf32> to vector<16x32xbf16>
    %c0_6 = arith.constant 0 : index
    %c0_7 = arith.constant 0 : index
    %16 = vector.load %arg3[%c0_6, %c0_7] : memref<32x128xbf16, #tpu.memory_space<vmem>>, vector<32x128xbf16>
    %cst_8 = arith.constant dense<0.000000e+00> : vector<16x128xf32>
    %17 = tpu.matmul %15, %16, %cst_8 {dimension_numbers = #tpu.dot_dimension_numbers<[1], [0], [0], [1], [0, 0, 1, 1], [], []>} : vector<16x32xbf16>, vector<32x128xbf16>, vector<16x128xf32> -> vector<16x128xf32>
    %18 = tpu.iota {dimensions = array<i32: 1>} : vector<16x128xi32>
    %19 = vector.broadcast %3 : vector<16x1xi32> to vector<16x128xi32>
    %20 = arith.cmpi eq, %18, %19 : vector<16x128xi32>
    %cst_9 = arith.constant 2.000000e-01 : f32
    %21 = vector.broadcast %cst_9 : f32 to vector<16x128xf32>
    %22 = arith.subf %17, %21 : vector<16x128xf32>
    %23 = arith.select %20, %22, %17 : vector<16x128xi1>, vector<16x128xf32>
    %cst_10 = arith.constant 3.000000e+01 : f32
    %24 = vector.broadcast %cst_10 : f32 to vector<16x128xf32>
    %25 = arith.mulf %24, %23 : vector<16x128xf32>
    %cst_11 = arith.constant 0.000000e+00 : f32
    %26 = vector.broadcast %cst_11 : f32 to vector<16x128xf32>
    %27 = arith.select %20, %25, %26 : vector<16x128xi1>, vector<16x128xf32>
    %cst_12 = arith.constant dense<0.000000e+00> : vector<16xf32>
    %28 = vector.multi_reduction <add>, %27, %cst_12 [1] : vector<16x128xf32> to vector<16xf32>
    %29 = vector.shape_cast %28 : vector<16xf32> to vector<16x1xf32>
    %30 = vector.broadcast %29 : vector<16x1xf32> to vector<16x128xf32>
    %31 = arith.cmpf oge, %25, %30 : vector<16x128xf32>
    %cst_13 = arith.constant 0.000000e+00 : f32
    %32 = vector.broadcast %cst_13 : f32 to vector<16x128xf32>
    %33 = arith.select %31, %25, %32 : vector<16x128xi1>, vector<16x128xf32>
    %cst_14 = arith.constant dense<0xFF800000> : vector<16xf32>
    %34 = vector.multi_reduction <maximumf>, %33, %cst_14 [1] : vector<16x128xf32> to vector<16xf32>
    %35 = vector.shape_cast %34 : vector<16xf32> to vector<16x1xf32>
    %36 = vector.broadcast %35 : vector<16x1xf32> to vector<16x128xf32>
    %37 = arith.subf %25, %36 : vector<16x128xf32>
    %cst_15 = arith.constant 0.000000e+00 : f32
    %38 = vector.broadcast %cst_15 : f32 to vector<16x1xf32>
    %39 = arith.subf %38, %35 : vector<16x1xf32>
    %40 = vector.shape_cast %39 : vector<16x1xf32> to vector<16x1xf32>
    %41 = vector.broadcast %40 : vector<16x1xf32> to vector<16x128xf32>
    %42 = arith.select %31, %37, %41 : vector<16x128xi1>, vector<16x128xf32>
    %43 = math.exp %42 : vector<16x128xf32>
    %cst_16 = arith.constant dense<0.000000e+00> : vector<16xf32>
    %44 = vector.multi_reduction <add>, %43, %cst_16 [1] : vector<16x128xf32> to vector<16xf32>
    %45 = vector.shape_cast %44 : vector<16xf32> to vector<16x1xf32>
    %46 = math.log %45 : vector<16x1xf32>
    %47 = arith.addf %46, %35 : vector<16x1xf32>
    %48 = arith.subf %47, %29 : vector<16x1xf32>
    %c0_17 = arith.constant 0 : index
    %c0_18 = arith.constant 0 : index
    %c0_19 = arith.constant 0 : index
    %49 = vector.load %arg5[%c0_17, %c0_18, %c0_19] : memref<1x1x1xf32, #tpu.memory_space<vmem>>, vector<1x1x1xf32>
    %cst_20 = arith.constant 0.000000e+00 : f32
    %50 = vector.broadcast %cst_20 : f32 to vector<16x1xf32>
    %51 = arith.select %5, %48, %50 : vector<16x1xi1>, vector<16x1xf32>
    %52 = vector.shape_cast %51 : vector<16x1xf32> to vector<1x16x1xf32>
    %cst_21 = arith.constant dense<0.000000e+00> : vector<1xf32>
    %53 = vector.multi_reduction <add>, %52, %cst_21 [1, 2] : vector<1x16x1xf32> to vector<1xf32>
    %54 = vector.shape_cast %53 : vector<1xf32> to vector<1x1x1xf32>
    %55 = vector.extract %54[0, 0, 0] : f32 from vector<1x1x1xf32>
    %56 = vector.broadcast %55 : f32 to vector<1x1x1xf32>
    %57 = arith.addf %49, %56 : vector<1x1x1xf32>
    %c0_22 = arith.constant 0 : index
    %c0_23 = arith.constant 0 : index
    %c0_24 = arith.constant 0 : index
    %58 = vector.load %arg5[%c0_22, %c0_23, %c0_24] : memref<1x1x1xf32, #tpu.memory_space<vmem>>, vector<1x1x1xf32>
    tpu.vector_store %arg5[%c0_22, %c0_23, %c0_24], %57 {strides = array<i32>} : memref<1x1x1xf32, #tpu.memory_space<vmem>>, vector<1x1x1xf32>,
    %59 = arith.cmpf oge, %29, %35 : vector<16x1xf32>
    %60 = arith.andi %59, %5 : vector<16x1xi1>
    %c0_25 = arith.constant 0 : index
    %c0_26 = arith.constant 0 : index
    %c0_27 = arith.constant 0 : index
    %61 = vector.load %arg6[%c0_25, %c0_26, %c0_27] : memref<1x1x1xf32, #tpu.memory_space<vmem>>, vector<1x1x1xf32>
    %62 = arith.extui %60 : vector<16x1xi1> to vector<16x1xi32>
    %63 = arith.sitofp %62 : vector<16x1xi32> to vector<16x1xf32>
    %64 = vector.shape_cast %63 : vector<16x1xf32> to vector<1x16x1xf32>
    %cst_28 = arith.constant dense<0.000000e+00> : vector<1xf32>
    %65 = vector.multi_reduction <add>, %64, %cst_28 [1, 2] : vector<1x16x1xf32> to vector<1xf32>
    %66 = vector.shape_cast %65 : vector<1xf32> to vector<1x1x1xf32>
    %67 = vector.extract %66[0, 0, 0] : f32 from vector<1x1x1xf32>
    %68 = vector.broadcast %67 : f32 to vector<1x1x1xf32>
    %69 = arith.addf %61, %68 : vector<1x1x1xf32>
    %c0_29 = arith.constant 0 : index
    %c0_30 = arith.constant 0 : index
    %c0_31 = arith.constant 0 : index
    %70 = vector.load %arg6[%c0_29, %c0_30, %c0_31] : memref<1x1x1xf32, #tpu.memory_space<vmem>>, vector<1x1x1xf32>
    tpu.vector_store %arg6[%c0_29, %c0_30, %c0_31], %69 {strides = array<i32>} : memref<1x1x1xf32, #tpu.memory_space<vmem>>, vector<1x1x1xf32>,
    return
  }
  func.func @transform_0(%arg0: i32, %arg1: i32) -> (i32, i32) {
    %c1_i32 = arith.constant 1 : i32
    %0 = arith.muli %arg0, %c1_i32 : i32
    %1 = arith.addi %0, %arg1 : i32
    %c0_i32 = arith.constant 0 : i32
    %c0_i32_0 = arith.constant 0 : i32
    return %1, %c0_i32 : i32, i32
  }
  func.func @transform_1(%arg0: i32, %arg1: i32) -> (i32, i32) {
    %c0_i32 = arith.constant 0 : i32
    %c0_i32_0 = arith.constant 0 : i32
    %c0_i32_1 = arith.constant 0 : i32
    return %c0_i32, %c0_i32_0 : i32, i32
  }
  func.func @transform_2(%arg0: i32, %arg1: i32) -> (i32, i32) {
    %c1_i32 = arith.constant 1 : i32
    %0 = arith.muli %arg0, %c1_i32 : i32
    %1 = arith.addi %0, %arg1 : i32
    %c0_i32 = arith.constant 0 : i32
    %c0_i32_0 = arith.constant 0 : i32
    return %1, %c0_i32 : i32, i32
  }
  func.func @transform_3(%arg0: i32, %arg1: i32) -> (i32, i32, i32) {
    %c0_i32 = arith.constant 0 : i32
    %c0_i32_0 = arith.constant 0 : i32
    %c0_i32_1 = arith.constant 0 : i32
    return %arg0, %c0_i32, %c0_i32_0 : i32, i32, i32
  }
  func.func @transform_4(%arg0: i32, %arg1: i32) -> (i32, i32, i32) {
    %c0_i32 = arith.constant 0 : i32
    %c0_i32_0 = arith.constant 0 : i32
    %c0_i32_1 = arith.constant 0 : i32
    return %arg0, %c0_i32, %c0_i32_0 : i32, i32, i32
  }
}

module attributes {stable_mosaic.version = 11 : i64} {
  func.func @_armsoftmax_kernel(%arg0: i32, %arg1: i32, %arg2: memref<16x32xf32, #tpu.memory_space<vmem>>, %arg3: memref<32x128xbf16, #tpu.memory_space<vmem>>, %arg4: memref<16x1xi32, #tpu.memory_space<vmem>>, %arg5: memref<1x1x1xf32, #tpu.memory_space<vmem>>, %arg6: memref<1x1x1xf32, #tpu.memory_space<vmem>>) attributes {dimension_semantics = [#tpu.dimension_semantics<parallel>, #tpu.dimension_semantics<arbitrary>], iteration_bounds = array<i64: 1, 1>, scalar_prefetch = 0 : i64, scratch_operands = 0 : i64, tpu.core_type = #tpu.core_type<tc>, window_params = [{transform_indices = @transform_0, window_bounds = array<i64: 16, 32>}, {pipeline_mode = #tpu.pipeline_mode<synchronous>, transform_indices = @transform_1, window_bounds = array<i64: 32, 128>}, {transform_indices = @transform_2, window_bounds = array<i64: 16, 1>}, {transform_indices = @transform_3, window_bounds = array<i64: 1, 1, 1>}, {transform_indices = @transform_4, window_bounds = array<i64: 1, 1, 1>}]} {
    %c0_i32 = arith.constant 0 : i32
    %0 = arith.cmpi eq, %arg1, %c0_i32 : i32
    %1 = arith.extui %0 : i1 to i32
    %c0_i32_0 = arith.constant 0 : i32
    %2 = arith.cmpi ne, %1, %c0_i32_0 : i32
    scf.if %2 {
      %cst_32 = arith.constant 0.000000e+00 : f32
      %71 = vector.broadcast %cst_32 : f32 to vector<1x1x1xf32>
      %c0_33 = arith.constant 0 : index
      %c0_34 = arith.constant 0 : index
      %c0_35 = arith.constant 0 : index
      %72 = vector.load %arg5[%c0_33, %c0_34, %c0_35] : memref<1x1x1xf32, #tpu.memory_space<vmem>>, vector<1x1x1xf32>
      tpu.vector_store %arg5[%c0_33, %c0_34, %c0_35], %71 {strides = array<i32>} : memref<1x1x1xf32, #tpu.memory_space<vmem>>, vector<1x1x1xf32>,
      %cst_36 = arith.constant 0.000000e+00 : f32
      %73 = vector.broadcast %cst_36 : f32 to vector<1x1x1xf32>
      %c0_37 = arith.constant 0 : index
      %c0_38 = arith.constant 0 : index
      %c0_39 = arith.constant 0 : index
      %74 = vector.load %arg6[%c0_37, %c0_38, %c0_39] : memref<1x1x1xf32, #tpu.memory_space<vmem>>, vector<1x1x1xf32>
      tpu.vector_store %arg6[%c0_37, %c0_38, %c0_39], %73 {strides = array<i32>} : memref<1x1x1xf32, #tpu.memory_space<vmem>>, vector<1x1x1xf32>,
    } else {
    }
    %c0 = arith.constant 0 : index
    %c0_1 = arith.constant 0 : index
    %3 = vector.load %arg4[%c0, %c0_1] : memref<16x1xi32, #tpu.memory_space<vmem>>, vector<16x1xi32>
    %c0_i32_2 = arith.constant 0 : i32
    %4 = vector.broadcast %c0_i32_2 : i32 to vector<16x1xi32>
    %5 = arith.cmpi sge, %3, %4 : vector<16x1xi32>
    %c0_3 = arith.constant 0 : index
    %c0_4 = arith.constant 0 : index
    %6 = vector.load %arg2[%c0_3, %c0_4] : memref<16x32xf32, #tpu.memory_space<vmem>>, vector<16x32xf32>
    %7 = arith.mulf %6, %6 : vector<16x32xf32>
    %cst = arith.constant dense<0.000000e+00> : vector<16xf32>
    %8 = vector.multi_reduction <add>, %7, %cst [1] : vector<16x32xf32> to vector<16xf32>
    %9 = vector.shape_cast %8 : vector<16xf32> to vector<16x1xf32>
    %cst_5 = arith.constant 1.000000e-24 : f32
    %10 = vector.broadcast %cst_5 : f32 to vector<16x1xf32>
    %11 = arith.maximumf %9, %10 : vector<16x1xf32>
    %12 = math.rsqrt %11 : vector<16x1xf32>
    %13 = vector.broadcast %12 : vector<16x1xf32> to vector<16x32xf32>
    %14 = arith.mulf %6, %13 : vector<16x32xf32>
    %15 = arith.truncf %14 : vector<16x32xf32> to vector<16x32xbf16>
    %c0_6 = arith.constant 0 : index
    %c0_7 = arith.constant 0 : index
    %16 = vector.load %arg3[%c0_6, %c0_7] : memref<32x128xbf16, #tpu.memory_space<vmem>>, vector<32x128xbf16>
    %cst_8 = arith.constant dense<0.000000e+00> : vector<16x128xf32>
    %17 = tpu.matmul %15, %16, %cst_8 {dimension_numbers = #tpu.dot_dimension_numbers<[1], [0], [0], [1], [0, 0, 1, 1], [], []>} : vector<16x32xbf16>, vector<32x128xbf16>, vector<16x128xf32> -> vector<16x128xf32>
    %18 = tpu.iota {dimensions = array<i32: 1>} : vector<16x128xi32>
    %19 = vector.broadcast %3 : vector<16x1xi32> to vector<16x128xi32>
    %20 = arith.cmpi eq, %18, %19 : vector<16x128xi32>
    %cst_9 = arith.constant 2.000000e-01 : f32
    %21 = vector.broadcast %cst_9 : f32 to vector<16x128xf32>
    %22 = arith.subf %17, %21 : vector<16x128xf32>
    %23 = arith.select %20, %22, %17 : vector<16x128xi1>, vector<16x128xf32>
    %cst_10 = arith.constant 3.000000e+01 : f32
    %24 = vector.broadcast %cst_10 : f32 to vector<16x128xf32>
    %25 = arith.mulf %24, %23 : vector<16x128xf32>
    %cst_11 = arith.constant 0.000000e+00 : f32
    %26 = vector.broadcast %cst_11 : f32 to vector<16x128xf32>
    %27 = arith.select %20, %25, %26 : vector<16x128xi1>, vector<16x128xf32>
    %cst_12 = arith.constant dense<0.000000e+00> : vector<16xf32>
    %28 = vector.multi_reduction <add>, %27, %cst_12 [1] : vector<16x128xf32> to vector<16xf32>
    %29 = vector.shape_cast %28 : vector<16xf32> to vector<16x1xf32>
    %30 = vector.broadcast %29 : vector<16x1xf32> to vector<16x128xf32>
    %31 = arith.cmpf oge, %25, %30 : vector<16x128xf32>
    %cst_13 = arith.constant 0.000000e+00 : f32
    %32 = vector.broadcast %cst_13 : f32 to vector<16x128xf32>
    %33 = arith.select %31, %25, %32 : vector<16x128xi1>, vector<16x128xf32>
    %cst_14 = arith.constant dense<0xFF800000> : vector<16xf32>
    %34 = vector.multi_reduction <maximumf>, %33, %cst_14 [1] : vector<16x128xf32> to vector<16xf32>
    %35 = vector.shape_cast %34 : vector<16xf32> to vector<16x1xf32>
    %36 = vector.broadcast %35 : vector<16x1xf32> to vector<16x128xf32>
    %37 = arith.subf %25, %36 : vector<16x128xf32>
    %cst_15 = arith.constant 0.000000e+00 : f32
    %38 = vector.broadcast %cst_15 : f32 to vector<16x1xf32>
    %39 = arith.subf %38, %35 : vector<16x1xf32>
    %40 = vector.shape_cast %39 : vector<16x1xf32> to vector<16x1xf32>
    %41 = vector.broadcast %40 : vector<16x1xf32> to vector<16x128xf32>
    %42 = arith.select %31, %37, %41 : vector<16x128xi1>, vector<16x128xf32>
    %43 = math.exp %42 : vector<16x128xf32>
    %cst_16 = arith.constant dense<0.000000e+00> : vector<16xf32>
    %44 = vector.multi_reduction <add>, %43, %cst_16 [1] : vector<16x128xf32> to vector<16xf32>
    %45 = vector.shape_cast %44 : vector<16xf32> to vector<16x1xf32>
    %46 = math.log %45 : vector<16x1xf32>
    %47 = arith.addf %46, %35 : vector<16x1xf32>
    %48 = arith.subf %47, %29 : vector<16x1xf32>
    %c0_17 = arith.constant 0 : index
    %c0_18 = arith.constant 0 : index
    %c0_19 = arith.constant 0 : index
    %49 = vector.load %arg5[%c0_17, %c0_18, %c0_19] : memref<1x1x1xf32, #tpu.memory_space<vmem>>, vector<1x1x1xf32>
    %cst_20 = arith.constant 0.000000e+00 : f32
    %50 = vector.broadcast %cst_20 : f32 to vector<16x1xf32>
    %51 = arith.select %5, %48, %50 : vector<16x1xi1>, vector<16x1xf32>
    %52 = vector.shape_cast %51 : vector<16x1xf32> to vector<1x16x1xf32>
    %cst_21 = arith.constant dense<0.000000e+00> : vector<1xf32>
    %53 = vector.multi_reduction <add>, %52, %cst_21 [1, 2] : vector<1x16x1xf32> to vector<1xf32>
    %54 = vector.shape_cast %53 : vector<1xf32> to vector<1x1x1xf32>
    %55 = vector.extract %54[0, 0, 0] : f32 from vector<1x1x1xf32>
    %56 = vector.broadcast %55 : f32 to vector<1x1x1xf32>
    %57 = arith.addf %49, %56 : vector<1x1x1xf32>
    %c0_22 = arith.constant 0 : index
    %c0_23 = arith.constant 0 : index
    %c0_24 = arith.constant 0 : index
    %58 = vector.load %arg5[%c0_22, %c0_23, %c0_24] : memref<1x1x1xf32, #tpu.memory_space<vmem>>, vector<1x1x1xf32>
    tpu.vector_store %arg5[%c0_22, %c0_23, %c0_24], %57 {strides = array<i32>} : memref<1x1x1xf32, #tpu.memory_space<vmem>>, vector<1x1x1xf32>,
    %59 = arith.cmpf oge, %29, %35 : vector<16x1xf32>
    %60 = arith.andi %59, %5 : vector<16x1xi1>
    %c0_25 = arith.constant 0 : index
    %c0_26 = arith.constant 0 : index
    %c0_27 = arith.constant 0 : index
    %61 = vector.load %arg6[%c0_25, %c0_26, %c0_27] : memref<1x1x1xf32, #tpu.memory_space<vmem>>, vector<1x1x1xf32>
    %62 = arith.extui %60 : vector<16x1xi1> to vector<16x1xi32>
    %63 = arith.sitofp %62 : vector<16x1xi32> to vector<16x1xf32>
    %64 = vector.shape_cast %63 : vector<16x1xf32> to vector<1x16x1xf32>
    %cst_28 = arith.constant dense<0.000000e+00> : vector<1xf32>
    %65 = vector.multi_reduction <add>, %64, %cst_28 [1, 2] : vector<1x16x1xf32> to vector<1xf32>
    %66 = vector.shape_cast %65 : vector<1xf32> to vector<1x1x1xf32>
    %67 = vector.extract %66[0, 0, 0] : f32 from vector<1x1x1xf32>
    %68 = vector.broadcast %67 : f32 to vector<1x1x1xf32>
    %69 = arith.addf %61, %68 : vector<1x1x1xf32>
    %c0_29 = arith.constant 0 : index
    %c0_30 = arith.constant 0 : index
    %c0_31 = arith.constant 0 : index
    %70 = vector.load %arg6[%c0_29, %c0_30, %c0_31] : memref<1x1x1xf32, #tpu.memory_space<vmem>>, vector<1x1x1xf32>
    tpu.vector_store %arg6[%c0_29, %c0_30, %c0_31], %69 {strides = array<i32>} : memref<1x1x1xf32, #tpu.memory_space<vmem>>, vector<1x1x1xf32>,
    return
  }
  func.func @transform_0(%arg0: i32, %arg1: i32) -> (i32, i32) {
    %c1_i32 = arith.constant 1 : i32
    %0 = arith.muli %arg0, %c1_i32 : i32
    %1 = arith.addi %0, %arg1 : i32
    %c0_i32 = arith.constant 0 : i32
    %c0_i32_0 = arith.constant 0 : i32
    return %1, %c0_i32 : i32, i32
  }
  func.func @transform_1(%arg0: i32, %arg1: i32) -> (i32, i32) {
    %c0_i32 = arith.constant 0 : i32
    %c0_i32_0 = arith.constant 0 : i32
    %c0_i32_1 = arith.constant 0 : i32
    return %c0_i32, %c0_i32_0 : i32, i32
  }
  func.func @transform_2(%arg0: i32, %arg1: i32) -> (i32, i32) {
    %c1_i32 = arith.constant 1 : i32
    %0 = arith.muli %arg0, %c1_i32 : i32
    %1 = arith.addi %0, %arg1 : i32
    %c0_i32 = arith.constant 0 : i32
    %c0_i32_0 = arith.constant 0 : i32
    return %1, %c0_i32 : i32, i32
  }
  func.func @transform_3(%arg0: i32, %arg1: i32) -> (i32, i32, i32) {
    %c0_i32 = arith.constant 0 : i32
    %c0_i32_0 = arith.constant 0 : i32
    %c0_i32_1 = arith.constant 0 : i32
    return %arg0, %c0_i32, %c0_i32_0 : i32, i32, i32
  }
  func.func @transform_4(%arg0: i32, %arg1: i32) -> (i32, i32, i32) {
    %c0_i32 = arith.constant 0 : i32
    %c0_i32_0 = arith.constant 0 : i32
    %c0_i32_1 = arith.constant 0 : i32
    return %arg0, %c0_i32, %c0_i32_0 : i32, i32, i32
  }
}

</mosaic_0001>

<llo_original>
// kernel: tpu_custom_call.1
$region0: #{tpu_custom_call.1}
  #allocation0 [shape = 'u32[]', space=smem, size = 0x4, offset = 0x4, fixed_abs, tag = 'smem constant byte address 0x4 - core index']
  #allocation1 [shape = 'u32[144,128]{1,0:T(1,128)}', space=vmem, size = 0x12000, scoped, tag = 'internal scratch']
  %s0 = inlined_call_operand.hbm [shape: f32[16,32], index: 0, kind: input, shape index: {}]
  %s1 = inlined_call_operand.hbm [shape: bf16[32,128], index: 1, kind: input, shape index: {}]
  %s2 = inlined_call_operand.hbm [shape: s32[16,1], index: 2, kind: input, shape index: {}]
  %s3 = inlined_call_operand.hbm [shape: f32[1,1,1], index: 3, kind: output, shape index: {0}]
  %s4 = inlined_call_operand.hbm [shape: f32[1,1,1], index: 4, kind: output, shape index: {1}]
  %5 = xla_tuple %s3, %s4
  %s6 = sld [smem:[#allocation0]]
  $region46: #{tpu_custom_call.1} parent=0
    _
  %s8 = ssub.s32 1, %s6
  %s9 = scalar_select 0, %s8, %s6
  $region1: #{tpu_custom_call.1} parent=0
    #allocation2 [shape = 'u8[8192]{0}', space=vmem, size = 0x2000, scoped, tag = 'input window, operand 0, single buffered']
    #allocation3 [shape = 's32[1]{0}', space=sflag, size = 0x4, scoped, tag = 'scoped memory for tpu_custom_call.1']
    #allocation4 [shape = 's32[1]{0}', space=sflag, size = 0x4, scoped, tag = 'scoped memory for tpu_custom_call.1']
    #allocation5 [shape = 'u8[8192]{0}', space=vmem, size = 0x2000, scoped, tag = 'input window, operand 1, single buffered']
    #allocation6 [shape = 's32[1]{0}', space=sflag, size = 0x4, scoped, tag = 'scoped memory for tpu_custom_call.1']
    #allocation7 [shape = 'u8[8192]{0}', space=vmem, size = 0x2000, scoped, tag = 'input window, operand 2, single buffered']
    #allocation8 [shape = 'u8[512]{0}', space=vmem, size = 0x400, scoped, tag = 'output window, operand 0, single buffered']
    #allocation9 [shape = 'u8[512]{0}', space=vmem, size = 0x400, scoped, tag = 'output window, operand 1, single buffered']
    #allocation10 [shape = 's32[1]{0}', space=sflag, size = 0x4, scoped, tag = 'scoped memory for tpu_custom_call.1']
    %10 = vsyncpa [#allocation3], 0
    %11 = vsyncpa [#allocation6], 0
    %12 = vsyncpa [#allocation4], 0
    %13 = vsyncpa [#allocation10], 0
    // Predicated region
    $region2: #{tpu_custom_call.1} parent=1 // pred_check
      _
    $region3: #{tpu_custom_call.1} parent=1 // pred_check_branch
      %15 = sbr.rel (0) target = $region5
    $region4: #{tpu_custom_call.1} parent=1 // pred_region
      %s16 = sadd.s32 0, 0
      %s17 = smul.u32 2, %s16
      %s19 = ssub.s32 256, 256
      %20 = vsyncadd [#allocation3], %s19
      %s21 = smul.addr %s17, 128
      %s22 = scalar_lea.hbm %s0, %s21
      %s23 = sshll.u32 [#allocation2], 4
      %s24 = int_to_ptr.vmem [resolvable:$true] %s23
      %29 = dma.hbm_to_vmem [thread:$0]  %s22, 256, %s24, [#allocation3], 128, 128, 8
    $region5: #{tpu_custom_call.1} parent=1 // pred_fallthru
      _
    // Predicated region
    $region6: #{tpu_custom_call.1} parent=1 // pred_check
      _
    $region7: #{tpu_custom_call.1} parent=1 // pred_check_branch
      %31 = sbr.rel (0) target = $region9
    $region8: #{tpu_custom_call.1} parent=1 // pred_region
      %s33 = ssub.s32 256, 256
      %34 = vsyncadd [#allocation6], %s33
      %s35 = sshll.u32 [#allocation5], 4
      %s36 = int_to_ptr.vmem [resolvable:$true] %s35
      %41 = dma.hbm_to_vmem [thread:$0]  %s1, 256, %s36, [#allocation6], 64, 64, 4
    $region9: #{tpu_custom_call.1} parent=1 // pred_fallthru
      _
    // Predicated region
    $region10: #{tpu_custom_call.1} parent=1 // pred_check
      _
    $region11: #{tpu_custom_call.1} parent=1 // pred_check_branch
      %43 = sbr.rel (0) target = $region13
    $region12: #{tpu_custom_call.1} parent=1 // pred_region
      %s44 = sadd.s32 0, 0
      %s45 = smul.u32 2, %s44
      %s47 = ssub.s32 256, 256
      %48 = vsyncadd [#allocation6], %s47
      %s49 = smul.addr %s45, 128
      %s50 = scalar_lea.hbm %s2, %s49
      %s51 = sshll.u32 [#allocation7], 4
      %s52 = int_to_ptr.vmem [resolvable:$true] %s51
      %57 = dma.hbm_to_vmem [thread:$0]  %s50, 256, %s52, [#allocation6], 128, 128, 8
    $region13: #{tpu_custom_call.1} parent=1 // pred_fallthru
      _
    // Predicated region
    $region14: #{tpu_custom_call.1} parent=1 // pred_check
      _
    $region15: #{tpu_custom_call.1} parent=1 // pred_check_branch
      %59 = sbr.rel (0) target = $region17
    $region16: #{tpu_custom_call.1} parent=1 // pred_region
      %60 = dma.done [#allocation3], 256
    $region17: #{tpu_custom_call.1} parent=1 // pred_fallthru
      _
    // Predicated region
    $region18: #{tpu_custom_call.1} parent=1 // pred_check
      _
    $region19: #{tpu_custom_call.1} parent=1 // pred_check_branch
      %62 = sbr.rel (0) target = $region21
    $region20: #{tpu_custom_call.1} parent=1 // pred_region
      %63 = dma.done [#allocation6], 256
    $region21: #{tpu_custom_call.1} parent=1 // pred_fallthru
      _
    // Predicated region
    $region22: #{tpu_custom_call.1} parent=1 // pred_check
      _
    $region23: #{tpu_custom_call.1} parent=1 // pred_check_branch
      %65 = sbr.rel (0) target = $region25
    $region24: #{tpu_custom_call.1} parent=1 // pred_region
      %66 = dma.done [#allocation6], 256
    $region25: #{tpu_custom_call.1} parent=1 // pred_fallthru
      _
    %s67 = sadd.s32 0, 0
    %s68 = smul.u32 2, %s67
    %s69 = sadd.s32 0, 0
    %s70 = smul.u32 2, %s69
    %p72 = scmp.eq.s32.totalorder 0, 0
    // Predicated region
    $region26: #{tpu_custom_call.1} parent=1 // pred_check
      %p73 = pneg %p72
    $region27: #{tpu_custom_call.1} parent=1 // pred_check_branch
      %75 = sbr.rel (%p73) target = $region29
    $region28: #{tpu_custom_call.1} parent=1 // pred_region
      %vm76 = vcmask 0
      %77 = vst.msk [vmem:[#allocation8] sm:$0x1] %vm76, 0.0
      %78 = vst.msk [vmem:[#allocation9] sm:$0x1] %vm76, 0.0
    $region29: #{tpu_custom_call.1} parent=1 // pred_fallthru
      _
    %v79 = vld [vmem:[#allocation7] sm:$0xff]
    %v80 = vld [vmem:[#allocation7 + $0x8] sm:$0xff]
    %vm81 = vcmp.ge.s32.totalorder %v79, 0
    %vm82 = vcmp.ge.s32.totalorder %v80, 0
    %v83 = vld [vmem:[#allocation2] sm:$0xff]
    %v84 = vld [vmem:[#allocation2 + $0x8] sm:$0xff]
    %v85 = vmul.f32 %v83, %v83
    %v86 = vmul.f32 %v84, %v84
    %vm87 = vcmask 261120
    %v88 = vsel %vm87, %v85, 0.0
    %89 = vadd.xlane.f32.xlu0 %v88
    %v90 = vpop.xlane.xlu0 %89
    %v91 = vsel %vm87, %v86, 0.0
    %92 = vadd.xlane.f32.xlu0 %v91
    %v93 = vpop.xlane.xlu0 %92
    %v94 = vmax.f32 %v90, 1e-24
    %v95 = vmax.f32 %v93, 1e-24
    %v96 = vrsqrt.pop %v94
    %v97 = vrsqrt.pop %v95
    %v98 = vmul.f32 %v83, %v96
    %v99 = vmul.f32 %v84, %v97
    %v100 = vpack.c.bf16 %v99, %v98
    %v101 = vld [vmem:[#allocation5] sm:$0xf]
    %v102 = vld [vmem:[#allocation5 + $0x4] sm:$0xf]
    %v103 = vld [vmem:[#allocation5 + $0x8] sm:$0xf]
    %v104 = vld [vmem:[#allocation5 + $0xc] sm:$0xf]
    %v109 = vunpack.c.l.b16 %v101
    %v110 = vunpack.c.l.b16 %v102
    %v111 = vunpack.c.l.b16 %v103
    %v112 = vunpack.c.l.b16 %v104
    %v113 = vpack.c.b16 %v110, %v109
    %v114 = vpack.c.b16 %v112, %v111
    %v118 = vsel %vm87, %v100, 0
    %120 = vmatprep.subr.bf16.mxu0 0
    %121 = vmatpush1.bf16.msra.mxu0 %v113
    %122 = vmatprep.subr.bf16.mxu0 0
    %123 = vmatpush1.bf16.msra.mxu0 %v114
    %124 = vmatprep.subr.bf16.mxu0 0
    %125 = vmatpush1.bf16.msra.mxu0 0
    %126 = vmatprep.subr.bf16.mxu0 0
    %127 = vmatpush1.bf16.msra.mxu0 0
    %128 = vmatprep.subr.bf16.mxu0 0
    %129 = vmatpush1.bf16.msra.mxu0 0
    %130 = vmatprep.subr.bf16.mxu0 0
    %131 = vmatpush1.bf16.msra.mxu0 0
    %132 = vmatprep.subr.bf16.mxu0 0
    %133 = vmatpush1.bf16.msra.mxu0 0
    %134 = vmatprep.subr.bf16.mxu0 0
    %135 = vmatpush1.bf16.msra.mxu0 0
    %136 = vmatprep.subr.bf16.mxu0 0
    %137 = vmatpush1.bf16.msra.mxu0 0
    %138 = vmatprep.subr.bf16.mxu0 0
    %139 = vmatpush1.bf16.msra.mxu0 0
    %140 = vmatprep.subr.bf16.mxu0 0
    %141 = vmatpush1.bf16.msra.mxu0 0
    %142 = vmatprep.subr.bf16.mxu0 0
    %143 = vmatpush1.bf16.msra.mxu0 0
    %144 = vmatprep.subr.bf16.mxu0 0
    %145 = vmatpush1.bf16.msra.mxu0 0
    %146 = vmatprep.subr.bf16.mxu0 0
    %147 = vmatpush1.bf16.msra.mxu0 0
    %148 = vmatprep.subr.bf16.mxu0 0
    %149 = vmatpush1.bf16.msra.mxu0 0
    %150 = vmatprep.subr.bf16.mxu0 0
    %151 = vmatpush1.bf16.msra.mxu0 0
    %152 = vmatprep.mubr.bf16.mxu0 0
    %153 = vmatmul.mubr.bf16.gmra.mrb[0].mxu0 %v118
    %v154 = vpop.f32.mrb[0].mxu0
    %v155 = vadd.f32 0.0, %v154
    %v156 = vpop.f32.mrb[0].mxu0
    %v157 = vpop.f32.mrb[0].mxu0
    %v158 = vadd.f32 0.0, %v157
    %v159 = vpop.f32.mrb[0].mxu0
    %160 = vdwg.mxu0
    %v161 = vlaneseq
    %v162 = vand.u32 %v161, 127
    %163 = vset.pattern.permute.xlu0 0
    %164 = vperm.xlu0 %163, %v79
    %v165 = vpop.permute.xlu0 %164
    %166 = vset.pattern.permute.xlu0 0
    %167 = vperm.xlu0 %166, %v80
    %v168 = vpop.permute.xlu0 %167
    %vm169 = vcmp.eq.s32.totalorder %v162, %v165
    %vm170 = vcmp.eq.s32.totalorder %v162, %v168
    %v171 = vsub.f32 %v155, 0.2
    %v172 = vsub.f32 %v158, 0.2
    %v173 = vsel %vm169, %v171, %v155
    %v174 = vsel %vm170, %v172, %v158
    %v175 = vmul.f32 %v173, 30.0
    %v176 = vmul.f32 %v174, 30.0
    %v177 = vsel %vm169, %v175, 0.0
    %v178 = vsel %vm170, %v176, 0.0
    %179 = vadd.xlane.f32.xlu0 %v177
    %v180 = vpop.xlane.xlu0 %179
    %181 = vadd.xlane.f32.xlu0 %v178
    %v182 = vpop.xlane.xlu0 %181
    %vm183 = vcmp.ge.f32.partialorder %v175, %v180
    %vm184 = vcmp.ge.f32.partialorder %v176, %v182
    %v185 = vsel %vm183, %v175, 0.0
    %v186 = vsel %vm184, %v176, 0.0
    %187 = vmax.xlane.f32.xlu0 %v185
    %v188 = vpop.xlane.xlu0 %187
    %189 = vmax.xlane.f32.xlu0 %v186
    %v190 = vpop.xlane.xlu0 %189
    %v191 = vsub.f32 %v175, %v188
    %v192 = vsub.f32 %v176, %v190
    %v193 = vsub.f32 0.0, %v188
    %v194 = vsub.f32 0.0, %v190
    %v195 = vsel %vm183, %v191, %v193
    %v196 = vsel %vm184, %v192, %v194
    %v197 = vmul.f32 %v195, 1.442695
    %v198 = vpow.pop %v197
    %v199 = vmul.f32 %v196, 1.442695
    %v200 = vpow.pop %v199
    %201 = vadd.xlane.f32.xlu0 %v198
    %v202 = vpop.xlane.xlu0 %201
    %203 = vadd.xlane.f32.xlu0 %v200
    %v204 = vpop.xlane.xlu0 %203
    %v205 = vlog2.pop %v202
    %v206 = vmul.f32 %v205, 0.6931472
    %v207 = vlog2.pop %v204
    %v208 = vmul.f32 %v207, 0.6931472
    %v209 = vadd.f32 %v206, %v188
    %v210 = vadd.f32 %v208, %v190
    %v211 = vsub.f32 %v209, %v180
    %v212 = vsub.f32 %v210, %v182
    %v213 = vld [vmem:[#allocation8] sm:$0x1]
    %v214 = vsel %vm81, %v211, 0.0
    %v215 = vsel %vm82, %v212, 0.0
    %vm216 = vcmask 7168
    %v217 = vsel %vm216, %v214, 0.0
    %v218 = vsel %vm216, %v215, 0.0
    %v219 = vadd.f32 %v217, %v218
    %220 = vadd.xlane.f32.xlu0 %v219
    %v221 = vpop.xlane.xlu0 %220
    %v222 = vrot.slane %v221, 4
    %v223 = vadd.f32 %v221, %v222
    %v224 = vrot.slane %v223, 2
    %v225 = vadd.f32 %v223, %v224
    %v226 = vrot.slane %v225, 1
    %v227 = vadd.f32 %v225, %v226
    %s228 = vtos %v227
    %v229 = vstv %s228
    %v230 = vadd.f32 %v213, %v229
    %vm231 = vcmask 0
    %232 = vst.msk [vmem:[#allocation8] sm:$0x1] %vm231, %v230
    %vm233 = vcmp.ge.f32.partialorder %v180, %v188
    %vm234 = vcmp.ge.f32.partialorder %v182, %v190
    %vm235 = vmand %vm233, %vm81
    %vm236 = vmand %vm234, %vm82
    %v237 = vld [vmem:[#allocation9] sm:$0x1]
    %v238 = vsel %vm235, 1, 0
    %v239 = vsel %vm236, 1, 0
    %v240 = vcvt.s32.f32 %v238
    %v241 = vcvt.s32.f32 %v239
    %v242 = vsel %vm216, %v240, 0.0
    %v243 = vsel %vm216, %v241, 0.0
    %v244 = vadd.f32 %v242, %v243
    %245 = vadd.xlane.f32.xlu0 %v244
    %v246 = vpop.xlane.xlu0 %245
    %v247 = vrot.slane %v246, 4
    %v248 = vadd.f32 %v246, %v247
    %v249 = vrot.slane %v248, 2
    %v250 = vadd.f32 %v248, %v249
    %v251 = vrot.slane %v250, 1
    %v252 = vadd.f32 %v250, %v251
    %s253 = vtos %v252
    %v254 = vstv %s253
    %v255 = vadd.f32 %v237, %v254
    %256 = vst.msk [vmem:[#allocation9] sm:$0x1] %vm231, %v255
    // Predicated region
    $region30: #{tpu_custom_call.1} parent=1 // pred_check
      _
    $region31: #{tpu_custom_call.1} parent=1 // pred_check_branch
      %258 = sbr.rel (0) target = $region33
    $region32: #{tpu_custom_call.1} parent=1 // pred_region
      %s260 = ssub.s32 16, 16
      %261 = vsyncadd [#allocation4], %s260
      %s263 = sshll.u32 [#allocation8], 4
      %s264 = int_to_ptr.vmem [resolvable:$true] %s263
      %266 = dma.vmem_to_hbm [thread:$0]  %s264, 16, %s3, [#allocation4]
    $region33: #{tpu_custom_call.1} parent=1 // pred_fallthru
      _
    // Predicated region
    $region34: #{tpu_custom_call.1} parent=1 // pred_check
      _
    $region35: #{tpu_custom_call.1} parent=1 // pred_check_branch
      %268 = sbr.rel (0) target = $region37
    $region36: #{tpu_custom_call.1} parent=1 // pred_region
      %s270 = ssub.s32 16, 16
      %271 = vsyncadd [#allocation10], %s270
      %s273 = sshll.u32 [#allocation9], 4
      %s274 = int_to_ptr.vmem [resolvable:$true] %s273
      %276 = dma.vmem_to_hbm [thread:$0]  %s274, 16, %s4, [#allocation10]
    $region37: #{tpu_custom_call.1} parent=1 // pred_fallthru
      _
    // Predicated region
    $region38: #{tpu_custom_call.1} parent=1 // pred_check
      _
    $region39: #{tpu_custom_call.1} parent=1 // pred_check_branch
      %278 = sbr.rel (0) target = $region41
    $region40: #{tpu_custom_call.1} parent=1 // pred_region
      %279 = dma.done [#allocation4], 16
    $region41: #{tpu_custom_call.1} parent=1 // pred_fallthru
      _
    // Predicated region
    $region42: #{tpu_custom_call.1} parent=1 // pred_check
      _
    $region43: #{tpu_custom_call.1} parent=1 // pred_check_branch
      %281 = sbr.rel (0) target = $region45
    $region44: #{tpu_custom_call.1} parent=1 // pred_region
      %282 = dma.done [#allocation10], 16
    $region45: #{tpu_custom_call.1} parent=1 // pred_fallthru
      _
    %283 = vsyncpa [#allocation3], 1
    %284 = vsyncpa [#allocation6], 1
    %285 = vsyncpa [#allocation4], 1
    %286 = vsyncpa [#allocation10], 1

// kernel: tpu_custom_call.1
$region0: #{tpu_custom_call.1}
  #allocation0 [shape = 'u32[]', space=smem, size = 0x4, offset = 0x4, fixed_abs, tag = 'smem constant byte address 0x4 - core index']
  #allocation1 [shape = 'u32[144,128]{1,0:T(1,128)}', space=vmem, size = 0x12000, scoped, tag = 'internal scratch']
  %s0 = inlined_call_operand.hbm [shape: f32[16,32], index: 0, kind: input, shape index: {}]
  %s1 = inlined_call_operand.hbm [shape: bf16[32,128], index: 1, kind: input, shape index: {}]
  %s2 = inlined_call_operand.hbm [shape: s32[16,1], index: 2, kind: input, shape index: {}]
  %s3 = inlined_call_operand.hbm [shape: f32[1,1,1], index: 3, kind: output, shape index: {0}]
  %s4 = inlined_call_operand.hbm [shape: f32[1,1,1], index: 4, kind: output, shape index: {1}]
  %5 = xla_tuple %s3, %s4
  %s6 = sld [smem:[#allocation0]]
  $region46: #{tpu_custom_call.1} parent=0
    _
  %s8 = ssub.s32 1, %s6
  %s9 = scalar_select 0, %s8, %s6
  $region1: #{tpu_custom_call.1} parent=0
    #allocation2 [shape = 'u8[8192]{0}', space=vmem, size = 0x2000, scoped, tag = 'input window, operand 0, single buffered']
    #allocation3 [shape = 's32[1]{0}', space=sflag, size = 0x4, scoped, tag = 'scoped memory for tpu_custom_call.1']
    #allocation4 [shape = 's32[1]{0}', space=sflag, size = 0x4, scoped, tag = 'scoped memory for tpu_custom_call.1']
    #allocation5 [shape = 'u8[8192]{0}', space=vmem, size = 0x2000, scoped, tag = 'input window, operand 1, single buffered']
    #allocation6 [shape = 's32[1]{0}', space=sflag, size = 0x4, scoped, tag = 'scoped memory for tpu_custom_call.1']
    #allocation7 [shape = 'u8[8192]{0}', space=vmem, size = 0x2000, scoped, tag = 'input window, operand 2, single buffered']
    #allocation8 [shape = 'u8[512]{0}', space=vmem, size = 0x400, scoped, tag = 'output window, operand 0, single buffered']
    #allocation9 [shape = 'u8[512]{0}', space=vmem, size = 0x400, scoped, tag = 'output window, operand 1, single buffered']
    #allocation10 [shape = 's32[1]{0}', space=sflag, size = 0x4, scoped, tag = 'scoped memory for tpu_custom_call.1']
    %10 = vsyncpa [#allocation3], 0
    %11 = vsyncpa [#allocation6], 0
    %12 = vsyncpa [#allocation4], 0
    %13 = vsyncpa [#allocation10], 0
    // Predicated region
    $region2: #{tpu_custom_call.1} parent=1 // pred_check
      _
    $region3: #{tpu_custom_call.1} parent=1 // pred_check_branch
      %15 = sbr.rel (0) target = $region5
    $region4: #{tpu_custom_call.1} parent=1 // pred_region
      %s16 = sadd.s32 0, 0
      %s17 = smul.u32 2, %s16
      %s19 = ssub.s32 256, 256
      %20 = vsyncadd [#allocation3], %s19
      %s21 = smul.addr %s17, 128
      %s22 = scalar_lea.hbm %s0, %s21
      %s23 = sshll.u32 [#allocation2], 4
      %s24 = int_to_ptr.vmem [resolvable:$true] %s23
      %29 = dma.hbm_to_vmem [thread:$0]  %s22, 256, %s24, [#allocation3], 128, 128, 8
    $region5: #{tpu_custom_call.1} parent=1 // pred_fallthru
      _
    // Predicated region
    $region6: #{tpu_custom_call.1} parent=1 // pred_check
      _
    $region7: #{tpu_custom_call.1} parent=1 // pred_check_branch
      %31 = sbr.rel (0) target = $region9
    $region8: #{tpu_custom_call.1} parent=1 // pred_region
      %s33 = ssub.s32 256, 256
      %34 = vsyncadd [#allocation6], %s33
      %s35 = sshll.u32 [#allocation5], 4
      %s36 = int_to_ptr.vmem [resolvable:$true] %s35
      %41 = dma.hbm_to_vmem [thread:$0]  %s1, 256, %s36, [#allocation6], 64, 64, 4
    $region9: #{tpu_custom_call.1} parent=1 // pred_fallthru
      _
    // Predicated region
    $region10: #{tpu_custom_call.1} parent=1 // pred_check
      _
    $region11: #{tpu_custom_call.1} parent=1 // pred_check_branch
      %43 = sbr.rel (0) target = $region13
    $region12: #{tpu_custom_call.1} parent=1 // pred_region
      %s44 = sadd.s32 0, 0
      %s45 = smul.u32 2, %s44
      %s47 = ssub.s32 256, 256
      %48 = vsyncadd [#allocation6], %s47
      %s49 = smul.addr %s45, 128
      %s50 = scalar_lea.hbm %s2, %s49
      %s51 = sshll.u32 [#allocation7], 4
      %s52 = int_to_ptr.vmem [resolvable:$true] %s51
      %57 = dma.hbm_to_vmem [thread:$0]  %s50, 256, %s52, [#allocation6], 128, 128, 8
    $region13: #{tpu_custom_call.1} parent=1 // pred_fallthru
      _
    // Predicated region
    $region14: #{tpu_custom_call.1} parent=1 // pred_check
      _
    $region15: #{tpu_custom_call.1} parent=1 // pred_check_branch
      %59 = sbr.rel (0) target = $region17
    $region16: #{tpu_custom_call.1} parent=1 // pred_region
      %60 = dma.done [#allocation3], 256
    $region17: #{tpu_custom_call.1} parent=1 // pred_fallthru
      _
    // Predicated region
    $region18: #{tpu_custom_call.1} parent=1 // pred_check
      _
    $region19: #{tpu_custom_call.1} parent=1 // pred_check_branch
      %62 = sbr.rel (0) target = $region21
    $region20: #{tpu_custom_call.1} parent=1 // pred_region
      %63 = dma.done [#allocation6], 256
    $region21: #{tpu_custom_call.1} parent=1 // pred_fallthru
      _
    // Predicated region
    $region22: #{tpu_custom_call.1} parent=1 // pred_check
      _
    $region23: #{tpu_custom_call.1} parent=1 // pred_check_branch
      %65 = sbr.rel (0) target = $region25
    $region24: #{tpu_custom_call.1} parent=1 // pred_region
      %66 = dma.done [#allocation6], 256
    $region25: #{tpu_custom_call.1} parent=1 // pred_fallthru
      _
    %s67 = sadd.s32 0, 0
    %s68 = smul.u32 2, %s67
    %s69 = sadd.s32 0, 0
    %s70 = smul.u32 2, %s69
    %p72 = scmp.eq.s32.totalorder 0, 0
    // Predicated region
    $region26: #{tpu_custom_call.1} parent=1 // pred_check
      %p73 = pneg %p72
    $region27: #{tpu_custom_call.1} parent=1 // pred_check_branch
      %75 = sbr.rel (%p73) target = $region29
    $region28: #{tpu_custom_call.1} parent=1 // pred_region
      %vm76 = vcmask 0
      %77 = vst.msk [vmem:[#allocation8] sm:$0x1] %vm76, 0.0
      %78 = vst.msk [vmem:[#allocation9] sm:$0x1] %vm76, 0.0
    $region29: #{tpu_custom_call.1} parent=1 // pred_fallthru
      _
    %v79 = vld [vmem:[#allocation7] sm:$0xff]
    %v80 = vld [vmem:[#allocation7 + $0x8] sm:$0xff]
    %vm81 = vcmp.ge.s32.totalorder %v79, 0
    %vm82 = vcmp.ge.s32.totalorder %v80, 0
    %v83 = vld [vmem:[#allocation2] sm:$0xff]
    %v84 = vld [vmem:[#allocation2 + $0x8] sm:$0xff]
    %v85 = vmul.f32 %v83, %v83
    %v86 = vmul.f32 %v84, %v84
    %vm87 = vcmask 261120
    %v88 = vsel %vm87, %v85, 0.0
    %89 = vadd.xlane.f32.xlu0 %v88
    %v90 = vpop.xlane.xlu0 %89
    %v91 = vsel %vm87, %v86, 0.0
    %92 = vadd.xlane.f32.xlu0 %v91
    %v93 = vpop.xlane.xlu0 %92
    %v94 = vmax.f32 %v90, 1e-24
    %v95 = vmax.f32 %v93, 1e-24
    %v96 = vrsqrt.pop %v94
    %v97 = vrsqrt.pop %v95
    %v98 = vmul.f32 %v83, %v96
    %v99 = vmul.f32 %v84, %v97
    %v100 = vpack.c.bf16 %v99, %v98
    %v101 = vld [vmem:[#allocation5] sm:$0xf]
    %v102 = vld [vmem:[#allocation5 + $0x4] sm:$0xf]
    %v103 = vld [vmem:[#allocation5 + $0x8] sm:$0xf]
    %v104 = vld [vmem:[#allocation5 + $0xc] sm:$0xf]
    %v109 = vunpack.c.l.b16 %v101
    %v110 = vunpack.c.l.b16 %v102
    %v111 = vunpack.c.l.b16 %v103
    %v112 = vunpack.c.l.b16 %v104
    %v113 = vpack.c.b16 %v110, %v109
    %v114 = vpack.c.b16 %v112, %v111
    %v118 = vsel %vm87, %v100, 0
    %120 = vmatprep.subr.bf16.mxu0 0
    %121 = vmatpush1.bf16.msra.mxu0 %v113
    %122 = vmatprep.subr.bf16.mxu0 0
    %123 = vmatpush1.bf16.msra.mxu0 %v114
    %124 = vmatprep.subr.bf16.mxu0 0
    %125 = vmatpush1.bf16.msra.mxu0 0
    %126 = vmatprep.subr.bf16.mxu0 0
    %127 = vmatpush1.bf16.msra.mxu0 0
    %128 = vmatprep.subr.bf16.mxu0 0
    %129 = vmatpush1.bf16.msra.mxu0 0
    %130 = vmatprep.subr.bf16.mxu0 0
    %131 = vmatpush1.bf16.msra.mxu0 0
    %132 = vmatprep.subr.bf16.mxu0 0
    %133 = vmatpush1.bf16.msra.mxu0 0
    %134 = vmatprep.subr.bf16.mxu0 0
    %135 = vmatpush1.bf16.msra.mxu0 0
    %136 = vmatprep.subr.bf16.mxu0 0
    %137 = vmatpush1.bf16.msra.mxu0 0
    %138 = vmatprep.subr.bf16.mxu0 0
    %139 = vmatpush1.bf16.msra.mxu0 0
    %140 = vmatprep.subr.bf16.mxu0 0
    %141 = vmatpush1.bf16.msra.mxu0 0
    %142 = vmatprep.subr.bf16.mxu0 0
    %143 = vmatpush1.bf16.msra.mxu0 0
    %144 = vmatprep.subr.bf16.mxu0 0
    %145 = vmatpush1.bf16.msra.mxu0 0
    %146 = vmatprep.subr.bf16.mxu0 0
    %147 = vmatpush1.bf16.msra.mxu0 0
    %148 = vmatprep.subr.bf16.mxu0 0
    %149 = vmatpush1.bf16.msra.mxu0 0
    %150 = vmatprep.subr.bf16.mxu0 0
    %151 = vmatpush1.bf16.msra.mxu0 0
    %152 = vmatprep.mubr.bf16.mxu0 0
    %153 = vmatmul.mubr.bf16.gmra.mrb[0].mxu0 %v118
    %v154 = vpop.f32.mrb[0].mxu0
    %v155 = vadd.f32 0.0, %v154
    %v156 = vpop.f32.mrb[0].mxu0
    %v157 = vpop.f32.mrb[0].mxu0
    %v158 = vadd.f32 0.0, %v157
    %v159 = vpop.f32.mrb[0].mxu0
    %160 = vdwg.mxu0
    %v161 = vlaneseq
    %v162 = vand.u32 %v161, 127
    %163 = vset.pattern.permute.xlu0 0
    %164 = vperm.xlu0 %163, %v79
    %v165 = vpop.permute.xlu0 %164
    %166 = vset.pattern.permute.xlu0 0
    %167 = vperm.xlu0 %166, %v80
    %v168 = vpop.permute.xlu0 %167
    %vm169 = vcmp.eq.s32.totalorder %v162, %v165
    %vm170 = vcmp.eq.s32.totalorder %v162, %v168
    %v171 = vsub.f32 %v155, 0.2
    %v172 = vsub.f32 %v158, 0.2
    %v173 = vsel %vm169, %v171, %v155
    %v174 = vsel %vm170, %v172, %v158
    %v175 = vmul.f32 %v173, 30.0
    %v176 = vmul.f32 %v174, 30.0
    %v177 = vsel %vm169, %v175, 0.0
    %v178 = vsel %vm170, %v176, 0.0
    %179 = vadd.xlane.f32.xlu0 %v177
    %v180 = vpop.xlane.xlu0 %179
    %181 = vadd.xlane.f32.xlu0 %v178
    %v182 = vpop.xlane.xlu0 %181
    %vm183 = vcmp.ge.f32.partialorder %v175, %v180
    %vm184 = vcmp.ge.f32.partialorder %v176, %v182
    %v185 = vsel %vm183, %v175, 0.0
    %v186 = vsel %vm184, %v176, 0.0
    %187 = vmax.xlane.f32.xlu0 %v185
    %v188 = vpop.xlane.xlu0 %187
    %189 = vmax.xlane.f32.xlu0 %v186
    %v190 = vpop.xlane.xlu0 %189
    %v191 = vsub.f32 %v175, %v188
    %v192 = vsub.f32 %v176, %v190
    %v193 = vsub.f32 0.0, %v188
    %v194 = vsub.f32 0.0, %v190
    %v195 = vsel %vm183, %v191, %v193
    %v196 = vsel %vm184, %v192, %v194
    %v197 = vmul.f32 %v195, 1.442695
    %v198 = vpow.pop %v197
    %v199 = vmul.f32 %v196, 1.442695
    %v200 = vpow.pop %v199
    %201 = vadd.xlane.f32.xlu0 %v198
    %v202 = vpop.xlane.xlu0 %201
    %203 = vadd.xlane.f32.xlu0 %v200
    %v204 = vpop.xlane.xlu0 %203
    %v205 = vlog2.pop %v202
    %v206 = vmul.f32 %v205, 0.6931472
    %v207 = vlog2.pop %v204
    %v208 = vmul.f32 %v207, 0.6931472
    %v209 = vadd.f32 %v206, %v188
    %v210 = vadd.f32 %v208, %v190
    %v211 = vsub.f32 %v209, %v180
    %v212 = vsub.f32 %v210, %v182
    %v213 = vld [vmem:[#allocation8] sm:$0x1]
    %v214 = vsel %vm81, %v211, 0.0
    %v215 = vsel %vm82, %v212, 0.0
    %vm216 = vcmask 7168
    %v217 = vsel %vm216, %v214, 0.0
    %v218 = vsel %vm216, %v215, 0.0
    %v219 = vadd.f32 %v217, %v218
    %220 = vadd.xlane.f32.xlu0 %v219
    %v221 = vpop.xlane.xlu0 %220
    %v222 = vrot.slane %v221, 4
    %v223 = vadd.f32 %v221, %v222
    %v224 = vrot.slane %v223, 2
    %v225 = vadd.f32 %v223, %v224
    %v226 = vrot.slane %v225, 1
    %v227 = vadd.f32 %v225, %v226
    %s228 = vtos %v227
    %v229 = vstv %s228
    %v230 = vadd.f32 %v213, %v229
    %vm231 = vcmask 0
    %232 = vst.msk [vmem:[#allocation8] sm:$0x1] %vm231, %v230
    %vm233 = vcmp.ge.f32.partialorder %v180, %v188
    %vm234 = vcmp.ge.f32.partialorder %v182, %v190
    %vm235 = vmand %vm233, %vm81
    %vm236 = vmand %vm234, %vm82
    %v237 = vld [vmem:[#allocation9] sm:$0x1]
    %v238 = vsel %vm235, 1, 0
    %v239 = vsel %vm236, 1, 0
    %v240 = vcvt.s32.f32 %v238
    %v241 = vcvt.s32.f32 %v239
    %v242 = vsel %vm216, %v240, 0.0
    %v243 = vsel %vm216, %v241, 0.0
    %v244 = vadd.f32 %v242, %v243
    %245 = vadd.xlane.f32.xlu0 %v244
    %v246 = vpop.xlane.xlu0 %245
    %v247 = vrot.slane %v246, 4
    %v248 = vadd.f32 %v246, %v247
    %v249 = vrot.slane %v248, 2
    %v250 = vadd.f32 %v248, %v249
    %v251 = vrot.slane %v250, 1
    %v252 = vadd.f32 %v250, %v251
    %s253 = vtos %v252
    %v254 = vstv %s253
    %v255 = vadd.f32 %v237, %v254
    %256 = vst.msk [vmem:[#allocation9] sm:$0x1] %vm231, %v255
    // Predicated region
    $region30: #{tpu_custom_call.1} parent=1 // pred_check
      _
    $region31: #{tpu_custom_call.1} parent=1 // pred_check_branch
      %258 = sbr.rel (0) target = $region33
    $region32: #{tpu_custom_call.1} parent=1 // pred_region
      %s260 = ssub.s32 16, 16
      %261 = vsyncadd [#allocation4], %s260
      %s263 = sshll.u32 [#allocation8], 4
      %s264 = int_to_ptr.vmem [resolvable:$true] %s263
      %266 = dma.vmem_to_hbm [thread:$0]  %s264, 16, %s3, [#allocation4]
    $region33: #{tpu_custom_call.1} parent=1 // pred_fallthru
      _
    // Predicated region
    $region34: #{tpu_custom_call.1} parent=1 // pred_check
      _
    $region35: #{tpu_custom_call.1} parent=1 // pred_check_branch
      %268 = sbr.rel (0) target = $region37
    $region36: #{tpu_custom_call.1} parent=1 // pred_region
      %s270 = ssub.s32 16, 16
      %271 = vsyncadd [#allocation10], %s270
      %s273 = sshll.u32 [#allocation9], 4
      %s274 = int_to_ptr.vmem [resolvable:$true] %s273
      %276 = dma.vmem_to_hbm [thread:$0]  %s274, 16, %s4, [#allocation10]
    $region37: #{tpu_custom_call.1} parent=1 // pred_fallthru
      _
    // Predicated region
    $region38: #{tpu_custom_call.1} parent=1 // pred_check
      _
    $region39: #{tpu_custom_call.1} parent=1 // pred_check_branch
      %278 = sbr.rel (0) target = $region41
    $region40: #{tpu_custom_call.1} parent=1 // pred_region
      %279 = dma.done [#allocation4], 16
    $region41: #{tpu_custom_call.1} parent=1 // pred_fallthru
      _
    // Predicated region
    $region42: #{tpu_custom_call.1} parent=1 // pred_check
      _
    $region43: #{tpu_custom_call.1} parent=1 // pred_check_branch
      %281 = sbr.rel (0) target = $region45
    $region44: #{tpu_custom_call.1} parent=1 // pred_region
      %282 = dma.done [#allocation10], 16
    $region45: #{tpu_custom_call.1} parent=1 // pred_fallthru
      _
    %283 = vsyncpa [#allocation3], 1
    %284 = vsyncpa [#allocation6], 1
    %285 = vsyncpa [#allocation4], 1
    %286 = vsyncpa [#allocation10], 1

</llo_original>
